<compile_context>
chip_gen: v6e
topology: v6e:2x2x1
jax: 0.10.0
libtpu: 0.0.40
codegen_flags: <defaults>
</compile_context>

<pallas_src>
from functools import partial

import jax
import jax.numpy as jnp
from jax.experimental import pallas as pl
from jax.experimental.pallas import tpu as pltpu

HIDDEN1 = 256      # fc1 width
ATT_DIM = 64       # attention_a / attention_b width
HIDDEN2 = 128      # fc2 width
LRELU_SLOPE = 0.01


def _leaky(v):
    return jnp.where(v > 0, v, LRELU_SLOPE * v)


# ---------------------------------------------------------------------------
# Single fused kernel: one batch-tile per grid step.
#   x_ref : (b_tile*rows, input_dim)   flattened batch-tile of inputs
#   o_ref : (b_tile, out_pad)          lane-dense padded fc3 output
# All weights/biases are resident (constant index_map).
# ---------------------------------------------------------------------------
def _tram_fused_kernel(*refs, b_tile, rows, gate):
    if gate:
        (x_ref, w1_ref, b1_ref, wab_ref, bab_ref, wc_ref, bc_ref,
         w2_ref, b2_ref, w3_ref, b3_ref, o_ref) = refs
    else:
        (x_ref, w1_ref, b1_ref, w2_ref, b2_ref, w3_ref, b3_ref, o_ref) = refs

    # fc1 + LeakyReLU (dropout = identity in eval mode)
    out1 = _leaky(jnp.dot(x_ref[...], w1_ref[...],
                          preferred_element_type=jnp.float32) + b1_ref[...])

    if gate:
        # Literal (mathematically redundant) gated-attention branch, kept only
        # for faithfulness verification.  attention_a|attention_b fused into a
        # single (256,128) matmul, then the lane halves get tanh / sigmoid.
        ab = jnp.dot(out1, wab_ref[...],
                     preferred_element_type=jnp.float32) + bab_ref[...]
        gated = jnp.tanh(ab[:, :ATT_DIM]) * jax.nn.sigmoid(ab[:, ATT_DIM:])
        # attention_c: (m,64) -> (m,1) on the VPU/XLU (an N=1 MXU matmul would
        # waste the systolic array).
        c = jnp.sum(gated * wc_ref[...], axis=-1, keepdims=True) + bc_ref[...]
        # Softmax over the singleton transposed axis (PyTorch dim=1 of
        # (B,1,rows)) -> identically 1.0.
        e = jnp.exp(c - jnp.max(c, axis=-1, keepdims=True))
        attn = e / jnp.sum(e, axis=-1, keepdims=True)
        out1 = attn * out1
    # else: softmax over a singleton axis is identically 1.0, so the gated
    # branch is dead compute and the attention matmul is just a row sum.
    # Removing it is bit-exact (checked against the literal reference below).

    # Attention pooling: pooled[b] = sum_r attn[b, r] * out1[b, r]  (attn == 1)
    # Sublane reduction instead of a 0/1 segment-sum matmul.
    pooled = jnp.sum(out1.reshape(b_tile, rows, HIDDEN1), axis=1)

    # fc2 + LeakyReLU (dropout = identity in eval mode)
    out2 = _leaky(jnp.dot(pooled, w2_ref[...],
                          preferred_element_type=jnp.float32) + b2_ref[...])

    # fc3 — output width padded to a 128-lane multiple for lane-dense stores.
    o_ref[...] = jnp.dot(out2, w3_ref[...],
                         preferred_element_type=jnp.float32) + b3_ref[...]


def _pick_b_tile(B, rows, input_dim, out_pad, gate):
    """Batch-tile heuristic.

    Targets ~1024 MXU M-rows per grid step (amortizes ~0.35us/step overhead),
    keeps >= 2 grid steps when B is big enough (v7x megacore sharding via
    dimension_semantics), keeps tiled blocks (8,*)-aligned, and bounds the
    per-step activation footprint by a VMEM budget.
    """
    def step_bytes(bt):
        m = bt * rows
        xb = 2 * m * max(input_dim, 128) * 4          # double-buffered x tile
        ob = 2 * bt * out_pad * 4                     # double-buffered output
        inter = m * (HIDDEN1 + (HIDDEN1 + 2 * ATT_DIM if gate else 0)) * 4
        inter += bt * (HIDDEN1 + HIDDEN2) * 4
        return xb + ob + inter

    TARGET_M = 1024                 # MXU M-rows of work per grid step
    BUDGET = 20 * 1024 * 1024       # per-step activation bytes (<< 48 MiB limit)

    bt = max(1, TARGET_M // max(rows, 1))
    if bt >= B or B < 16:
        bt = B                      # single step: all blocks cover full dims
    else:
        # Tiled: multiple-of-8 b_tile (keeps m_block and the output block
        # (8,*)-aligned) and at least 2 grid steps for the two v7x TCs.
        bt = max(8, min((bt // 8) * 8, (B // 2 // 8) * 8))
        while bt > 8 and step_bytes(bt) > BUDGET:
            bt -= 8
    return bt


def tram_forward(x, params, *, b_tile=None, gate_branch=False):
    """x: (B, rows, input_dim) float32 -> (B, output) float32."""
    B, rows, input_dim = x.shape
    output = params["w3"].shape[-1]
    out_pad = pl.cdiv(output, 128) * 128          # lane-dense output width

    if b_tile is None:
        b_tile = _pick_b_tile(B, rows, input_dim, out_pad, gate_branch)
    grid_b = pl.cdiv(B, b_tile)
    b_padded = grid_b * b_tile
    if b_padded != B:
        x = jnp.pad(x, ((0, b_padded - B), (0, 0), (0, 0)))
    m_block = b_tile * rows
    x2d = x.reshape(b_padded * rows, input_dim)

    # ---- 2-D bias views + lane-dense padded fc3 ----------------------------
    b1 = params["b1"].reshape(1, HIDDEN1)
    b2 = params["b2"].reshape(1, HIDDEN2)
    w3p = jnp.zeros((HIDDEN2, out_pad), jnp.float32).at[:, :output].set(params["w3"])
    b3p = jnp.zeros((1, out_pad), jnp.float32).at[:, :output].set(
        params["b3"].reshape(1, output))

    const = lambda shape: pl.BlockSpec(shape, lambda i: (0, 0))

    in_specs = [
        pl.BlockSpec((m_block, input_dim), lambda i: (i, 0)),       # x tile
        const((input_dim, HIDDEN1)),                                # w1
        const((1, HIDDEN1)),                                        # b1
    ]
    args = [x2d, params["w1"], b1]
    if gate_branch:
        wab = jnp.concatenate([params["wa"], params["wb"]], axis=1)   # (256,128)
        bab = jnp.concatenate([params["ba"], params["bb"]]).reshape(1, 2 * ATT_DIM)
        wc = params["wc"].reshape(1, ATT_DIM)
        bc = params["bc"].reshape(1, 1)
        in_specs += [const((HIDDEN1, 2 * ATT_DIM)), const((1, 2 * ATT_DIM)),
                     const((1, ATT_DIM)), const((1, 1))]
        args += [wab, bab, wc, bc]
    in_specs += [
        const((HIDDEN1, HIDDEN2)),                                  # w2
        const((1, HIDDEN2)),                                        # b2
        const((HIDDEN2, out_pad)),                                  # w3 (padded)
        const((1, out_pad)),                                        # b3 (padded)
    ]
    args += [params["w2"], b2, w3p, b3p]

    kernel = partial(_tram_fused_kernel, b_tile=b_tile, rows=rows,
                     gate=gate_branch)

    out = pl.pallas_call(
        kernel,
        out_shape=jax.ShapeDtypeStruct((b_padded, out_pad), jnp.float32),
        grid=(grid_b,),
        in_specs=in_specs,
        out_specs=pl.BlockSpec((b_tile, out_pad), lambda i: (i, 0)),
        compiler_params=pltpu.CompilerParams(
            dimension_semantics=("parallel",),
            vmem_limit_bytes=48 * 1024 * 1024,
        ),
    )(*args)

    return out[:B, :output]


def init_params(key, input_dim, output):
    ks = jax.random.split(key, 12)
    f32 = jnp.float32
    return dict(
        # fc1: Linear(input_dim, 256)  (stored transposed vs. torch .weight)
        w1=jax.random.normal(ks[0], (input_dim, HIDDEN1), f32) * 0.05,
        b1=jax.random.normal(ks[1], (HIDDEN1,), f32) * 0.05,
        # attention_a / attention_b: Linear(256, 64)
        wa=jax.random.normal(ks[2], (HIDDEN1, ATT_DIM), f32) * 0.05,
        ba=jax.random.normal(ks[3], (ATT_DIM,), f32) * 0.05,
        wb=jax.random.normal(ks[4], (HIDDEN1, ATT_DIM), f32) * 0.05,
        bb=jax.random.normal(ks[5], (ATT_DIM,), f32) * 0.05,
        # attention_c: Linear(64, 1)  (weight kept in torch row form (1, 64))
        wc=jax.random.normal(ks[6], (1, ATT_DIM), f32) * 0.05,
        bc=jax.random.normal(ks[7], (1,), f32) * 0.05,
        # fc2: Linear(256, 128)
        w2=jax.random.normal(ks[8], (HIDDEN1, HIDDEN2), f32) * 0.05,
        b2=jax.random.normal(ks[9], (HIDDEN2,), f32) * 0.05,
        # fc3: Linear(128, output)
        w3=jax.random.normal(ks[10], (HIDDEN2, output), f32) * 0.05,
        b3=jax.random.normal(ks[11], (output,), f32) * 0.05,
    )


def tram_reference(x, p):
    """Pure-JAX literal mirror of the PyTorch forward (eval mode)."""
    out1 = _leaky(x @ p["w1"] + p["b1"])                          # (B, R, 256)
    a = jnp.tanh(out1 @ p["wa"] + p["ba"])
    g = jax.nn.sigmoid(out1 @ p["wb"] + p["bb"])
    gated = a * g
    c = gated @ p["wc"].T + p["bc"]                               # (B, R, 1)
    attn = jax.nn.softmax(jnp.swapaxes(c, 2, 1), axis=1)          # (B, 1, R)
    pooled = jnp.matmul(attn, out1).reshape(x.shape[0], HIDDEN1)  # (B, 256)
    out2 = _leaky(pooled @ p["w2"] + p["b2"])                     # (B, 128)
    return out2 @ p["w3"] + p["b3"]


if __name__ == "__main__":
    B, rows, input_dim, output = 2, 8, 32, 16
    key = jax.random.PRNGKey(0)
    kx, kp = jax.random.split(key)
    x = jax.random.normal(kx, (B, rows, input_dim), jnp.float32)
    params = init_params(kp, input_dim, output)

    ref = tram_reference(x, params)

    # Fast path: dead gated-attention branch removed (bit-exact vs reference).
    out = jax.block_until_ready(tram_forward(x, params))
    assert out.shape == (B, output), out.shape
    assert jnp.allclose(out, ref, atol=1e-4, rtol=1e-4), "fast path mismatch"

    # Literal path: gated branch + singleton-axis softmax computed in-kernel.
    out_lit = jax.block_until_ready(tram_forward(x, params, gate_branch=True))
    assert jnp.allclose(out_lit, ref, atol=1e-4, rtol=1e-4), "literal path mismatch"

    print("KERNEL_OK")
</pallas_src>

<mosaic_0001>
module attributes {stable_mosaic.version = 11 : i64} {
  func.func @_tram_fused_kernel(%arg0: i32, %arg1: memref<16x32xf32, #tpu.memory_space<vmem>>, %arg2: memref<32x256xf32, #tpu.memory_space<vmem>>, %arg3: memref<1x256xf32, #tpu.memory_space<vmem>>, %arg4: memref<256x128xf32, #tpu.memory_space<vmem>>, %arg5: memref<1x128xf32, #tpu.memory_space<vmem>>, %arg6: memref<128x128xf32, #tpu.memory_space<vmem>>, %arg7: memref<1x128xf32, #tpu.memory_space<vmem>>, %arg8: memref<2x128xf32, #tpu.memory_space<vmem>>) attributes {dimension_semantics = [#tpu.dimension_semantics<parallel>], iteration_bounds = array<i64: 1>, scalar_prefetch = 0 : i64, scratch_operands = 0 : i64, tpu.core_type = #tpu.core_type<tc>, window_params = [{transform_indices = @transform_0, window_bounds = array<i64: 16, 32>}, {pipeline_mode = #tpu.pipeline_mode<synchronous>, transform_indices = @transform_1, window_bounds = array<i64: 32, 256>}, {pipeline_mode = #tpu.pipeline_mode<synchronous>, transform_indices = @transform_2, window_bounds = array<i64: 1, 256>}, {pipeline_mode = #tpu.pipeline_mode<synchronous>, transform_indices = @transform_3, window_bounds = array<i64: 256, 128>}, {pipeline_mode = #tpu.pipeline_mode<synchronous>, transform_indices = @transform_4, window_bounds = array<i64: 1, 128>}, {pipeline_mode = #tpu.pipeline_mode<synchronous>, transform_indices = @transform_5, window_bounds = array<i64: 128, 128>}, {pipeline_mode = #tpu.pipeline_mode<synchronous>, transform_indices = @transform_6, window_bounds = array<i64: 1, 128>}, {transform_indices = @transform_7, window_bounds = array<i64: 2, 128>}]} {
    %c0 = arith.constant 0 : index
    %c0_0 = arith.constant 0 : index
    %0 = vector.load %arg1[%c0, %c0_0] : memref<16x32xf32, #tpu.memory_space<vmem>>, vector<16x32xf32>
    %c0_1 = arith.constant 0 : index
    %c0_2 = arith.constant 0 : index
    %1 = vector.load %arg2[%c0_1, %c0_2] : memref<32x256xf32, #tpu.memory_space<vmem>>, vector<32x256xf32>
    %cst = arith.constant dense<0.000000e+00> : vector<16x256xf32>
    %2 = tpu.matmul %0, %1, %cst {dimension_numbers = #tpu.dot_dimension_numbers<[1], [0], [0], [1], [0, 0, 1, 1], [], []>} : vector<16x32xf32>, vector<32x256xf32>, vector<16x256xf32> -> vector<16x256xf32>
    %c0_3 = arith.constant 0 : index
    %c0_4 = arith.constant 0 : index
    %3 = vector.load %arg3[%c0_3, %c0_4] : memref<1x256xf32, #tpu.memory_space<vmem>>, vector<1x256xf32>
    %4 = vector.broadcast %3 : vector<1x256xf32> to vector<16x256xf32>
    %5 = arith.addf %2, %4 : vector<16x256xf32>
    %cst_5 = arith.constant 0.000000e+00 : f32
    %6 = vector.broadcast %cst_5 : f32 to vector<16x256xf32>
    %7 = arith.cmpf ogt, %5, %6 : vector<16x256xf32>
    %cst_6 = arith.constant 0.00999999977 : f32
    %8 = vector.broadcast %cst_6 : f32 to vector<16x256xf32>
    %9 = arith.mulf %8, %5 : vector<16x256xf32>
    %10 = arith.select %7, %5, %9 : vector<16x256xi1>, vector<16x256xf32>
    %11 = vector.shape_cast %10 : vector<16x256xf32> to vector<2x8x256xf32>
    %cst_7 = arith.constant dense<0.000000e+00> : vector<2x256xf32>
    %12 = vector.multi_reduction <add>, %11, %cst_7 [1] : vector<2x8x256xf32> to vector<2x256xf32>
    %c0_8 = arith.constant 0 : index
    %c0_9 = arith.constant 0 : index
    %13 = vector.load %arg4[%c0_8, %c0_9] : memref<256x128xf32, #tpu.memory_space<vmem>>, vector<256x128xf32>
    %cst_10 = arith.constant dense<0.000000e+00> : vector<2x128xf32>
    %14 = tpu.matmul %12, %13, %cst_10 {dimension_numbers = #tpu.dot_dimension_numbers<[1], [0], [0], [1], [0, 0, 1, 1], [], []>} : vector<2x256xf32>, vector<256x128xf32>, vector<2x128xf32> -> vector<2x128xf32>
    %c0_11 = arith.constant 0 : index
    %c0_12 = arith.constant 0 : index
    %15 = vector.load %arg5[%c0_11, %c0_12] : memref<1x128xf32, #tpu.memory_space<vmem>>, vector<1x128xf32>
    %16 = vector.broadcast %15 : vector<1x128xf32> to vector<2x128xf32>
    %17 = arith.addf %14, %16 : vector<2x128xf32>
    %cst_13 = arith.constant 0.000000e+00 : f32
    %18 = vector.broadcast %cst_13 : f32 to vector<2x128xf32>
    %19 = arith.cmpf ogt, %17, %18 : vector<2x128xf32>
    %cst_14 = arith.constant 0.00999999977 : f32
    %20 = vector.broadcast %cst_14 : f32 to vector<2x128xf32>
    %21 = arith.mulf %20, %17 : vector<2x128xf32>
    %22 = arith.select %19, %17, %21 : vector<2x128xi1>, vector<2x128xf32>
    %c0_15 = arith.constant 0 : index
    %c0_16 = arith.constant 0 : index
    %23 = vector.load %arg6[%c0_15, %c0_16] : memref<128x128xf32, #tpu.memory_space<vmem>>, vector<128x128xf32>
    %cst_17 = arith.constant dense<0.000000e+00> : vector<2x128xf32>
    %24 = tpu.matmul %22, %23, %cst_17 {dimension_numbers = #tpu.dot_dimension_numbers<[1], [0], [0], [1], [0, 0, 1, 1], [], []>} : vector<2x128xf32>, vector<128x128xf32>, vector<2x128xf32> -> vector<2x128xf32>
    %c0_18 = arith.constant 0 : index
    %c0_19 = arith.constant 0 : index
    %25 = vector.load %arg7[%c0_18, %c0_19] : memref<1x128xf32, #tpu.memory_space<vmem>>, vector<1x128xf32>
    %26 = vector.broadcast %25 : vector<1x128xf32> to vector<2x128xf32>
    %27 = arith.addf %24, %26 : vector<2x128xf32>
    %c0_20 = arith.constant 0 : index
    %c0_21 = arith.constant 0 : index
    %28 = vector.load %arg8[%c0_20, %c0_21] : memref<2x128xf32, #tpu.memory_space<vmem>>, vector<2x128xf32>
    tpu.vector_store %arg8[%c0_20, %c0_21], %27 {strides = array<i32>} : memref<2x128xf32, #tpu.memory_space<vmem>>, vector<2x128xf32>,
    return
  }
  func.func @transform_0(%arg0: i32) -> (i32, i32) {
    %c0_i32 = arith.constant 0 : i32
    %c0_i32_0 = arith.constant 0 : i32
    return %arg0, %c0_i32 : i32, i32
  }
  func.func @transform_1(%arg0: i32) -> (i32, i32) {
    %c0_i32 = arith.constant 0 : i32
    %c0_i32_0 = arith.constant 0 : i32
    %c0_i32_1 = arith.constant 0 : i32
    return %c0_i32, %c0_i32_0 : i32, i32
  }
  func.func @transform_2(%arg0: i32) -> (i32, i32) {
    %c0_i32 = arith.constant 0 : i32
    %c0_i32_0 = arith.constant 0 : i32
    %c0_i32_1 = arith.constant 0 : i32
    return %c0_i32, %c0_i32_0 : i32, i32
  }
  func.func @transform_3(%arg0: i32) -> (i32, i32) {
    %c0_i32 = arith.constant 0 : i32
    %c0_i32_0 = arith.constant 0 : i32
    %c0_i32_1 = arith.constant 0 : i32
    return %c0_i32, %c0_i32_0 : i32, i32
  }
  func.func @transform_4(%arg0: i32) -> (i32, i32) {
    %c0_i32 = arith.constant 0 : i32
    %c0_i32_0 = arith.constant 0 : i32
    %c0_i32_1 = arith.constant 0 : i32
    return %c0_i32, %c0_i32_0 : i32, i32
  }
  func.func @transform_5(%arg0: i32) -> (i32, i32) {
    %c0_i32 = arith.constant 0 : i32
    %c0_i32_0 = arith.constant 0 : i32
    %c0_i32_1 = arith.constant 0 : i32
    return %c0_i32, %c0_i32_0 : i32, i32
  }
  func.func @transform_6(%arg0: i32) -> (i32, i32) {
    %c0_i32 = arith.constant 0 : i32
    %c0_i32_0 = arith.constant 0 : i32
    %c0_i32_1 = arith.constant 0 : i32
    return %c0_i32, %c0_i32_0 : i32, i32
  }
  func.func @transform_7(%arg0: i32) -> (i32, i32) {
    %c0_i32 = arith.constant 0 : i32
    %c0_i32_0 = arith.constant 0 : i32
    return %arg0, %c0_i32 : i32, i32
  }
}

</mosaic_0001>

<llo_original>
// kernel: tpu_custom_call.1
$region0: #{tpu_custom_call.1}
  #allocation0 [shape = 'u32[]', space=smem, size = 0x4, offset = 0x4, fixed_abs, tag = 'smem constant byte address 0x4 - core index']
  #allocation1 [shape = 'u32[144,128]{1,0:T(1,128)}', space=vmem, size = 0x12000, scoped, tag = 'internal scratch']
  %s0 = inlined_call_operand.hbm [shape: f32[16,32], index: 0, kind: input, shape index: {}]
  %s1 = inlined_call_operand.hbm [shape: f32[32,256], index: 1, kind: input, shape index: {}]
  %s2 = inlined_call_operand.vmem [shape: f32[1,256], index: 2, kind: input, shape index: {}]
  %s3 = inlined_call_operand.hbm [shape: f32[256,128], index: 3, kind: input, shape index: {}]
  %s4 = inlined_call_operand.vmem [shape: f32[1,128], index: 4, kind: input, shape index: {}]
  %s5 = inlined_call_operand.hbm [shape: f32[128,128], index: 5, kind: input, shape index: {}]
  %s6 = inlined_call_operand.vmem [shape: f32[1,128], index: 6, kind: input, shape index: {}]
  %s7 = inlined_call_operand.hbm [shape: f32[2,128], index: 7, kind: output, shape index: {}]
  %s8 = sld [smem:[#allocation0]]
  $region54: #{tpu_custom_call.1} parent=0
    _
  %s10 = ssub.s32 1, %s8
  %s11 = scalar_select 0, %s10, %s8
  $region1: #{tpu_custom_call.1} parent=0
    #allocation2 [shape = 'u8[8192]{0}', space=vmem, size = 0x2000, scoped, tag = 'input window, operand 0, single buffered']
    #allocation3 [shape = 's32[1]{0}', space=sflag, size = 0x4, scoped, tag = 'scoped memory for tpu_custom_call.1']
    #allocation4 [shape = 's32[1]{0}', space=sflag, size = 0x4, scoped, tag = 'scoped memory for tpu_custom_call.1']
    #allocation5 [shape = 'u8[32768]{0}', space=vmem, size = 0x8000, scoped, tag = 'input window, operand 1, single buffered']
    #allocation6 [shape = 's32[1]{0}', space=sflag, size = 0x4, scoped, tag = 'scoped memory for tpu_custom_call.1']
    #allocation7 [shape = 'u8[131072]{0}', space=vmem, size = 0x20000, scoped, tag = 'input window, operand 3, single buffered']
    #allocation8 [shape = 'u8[65536]{0}', space=vmem, size = 0x10000, scoped, tag = 'input window, operand 5, single buffered']
    #allocation9 [shape = 's32[1]{0}', space=sflag, size = 0x4, scoped, tag = 'scoped memory for tpu_custom_call.1']
    #allocation10 [shape = 'u8[1024]{0}', space=vmem, size = 0x400, scoped, tag = 'output window, operand 0, single buffered']
    %12 = vsyncpa [#allocation3], 0
    %13 = vsyncpa [#allocation6], 0
    %14 = vsyncpa [#allocation9], 0
    %15 = vsyncpa [#allocation4], 0
    // Predicated region
    $region2: #{tpu_custom_call.1} parent=1 // pred_check
      _
    $region3: #{tpu_custom_call.1} parent=1 // pred_check_branch
      %17 = sbr.rel (0) target = $region5
    $region4: #{tpu_custom_call.1} parent=1 // pred_region
      %s19 = ssub.s32 256, 256
      %20 = vsyncadd [#allocation3], %s19
      %s21 = sshll.u32 [#allocation2], 4
      %s22 = int_to_ptr.vmem [resolvable:$true] %s21
      %27 = dma.hbm_to_vmem [thread:$0]  %s0, 256, %s22, [#allocation3], 128, 128, 8
    $region5: #{tpu_custom_call.1} parent=1 // pred_fallthru
      _
    // Predicated region
    $region6: #{tpu_custom_call.1} parent=1 // pred_check
      _
    $region7: #{tpu_custom_call.1} parent=1 // pred_check_branch
      %29 = sbr.rel (0) target = $region9
    $region8: #{tpu_custom_call.1} parent=1 // pred_region
      %s31 = ssub.s32 1024, 1024
      %32 = vsyncadd [#allocation6], %s31
      %s33 = sshll.u32 [#allocation5], 4
      %s34 = int_to_ptr.vmem [resolvable:$true] %s33
      %39 = dma.hbm_to_vmem [thread:$0]  %s1, 1024, %s34, [#allocation6], 256, 256, 16
    $region9: #{tpu_custom_call.1} parent=1 // pred_fallthru
      _
    // Predicated region
    $region10: #{tpu_custom_call.1} parent=1 // pred_check
      _
    $region11: #{tpu_custom_call.1} parent=1 // pred_check_branch
      %41 = sbr.rel (0) target = $region13
    $region12: #{tpu_custom_call.1} parent=1 // pred_region
      _
    $region13: #{tpu_custom_call.1} parent=1 // pred_fallthru
      _
    // Predicated region
    $region14: #{tpu_custom_call.1} parent=1 // pred_check
      _
    $region15: #{tpu_custom_call.1} parent=1 // pred_check_branch
      %43 = sbr.rel (0) target = $region17
    $region16: #{tpu_custom_call.1} parent=1 // pred_region
      %s45 = ssub.s32 4096, 4096
      %46 = vsyncadd [#allocation6], %s45
      %s47 = sshll.u32 [#allocation7], 4
      %s48 = int_to_ptr.vmem [resolvable:$true] %s47
      %53 = dma.hbm_to_vmem [thread:$0]  %s3, 4096, %s48, [#allocation6], 128, 128, 8
    $region17: #{tpu_custom_call.1} parent=1 // pred_fallthru
      _
    // Predicated region
    $region18: #{tpu_custom_call.1} parent=1 // pred_check
      _
    $region19: #{tpu_custom_call.1} parent=1 // pred_check_branch
      %55 = sbr.rel (0) target = $region21
    $region20: #{tpu_custom_call.1} parent=1 // pred_region
      _
    $region21: #{tpu_custom_call.1} parent=1 // pred_fallthru
      _
    // Predicated region
    $region22: #{tpu_custom_call.1} parent=1 // pred_check
      _
    $region23: #{tpu_custom_call.1} parent=1 // pred_check_branch
      %57 = sbr.rel (0) target = $region25
    $region24: #{tpu_custom_call.1} parent=1 // pred_region
      %s59 = ssub.s32 2048, 2048
      %60 = vsyncadd [#allocation9], %s59
      %s61 = sshll.u32 [#allocation8], 4
      %s62 = int_to_ptr.vmem [resolvable:$true] %s61
      %67 = dma.hbm_to_vmem [thread:$0]  %s5, 2048, %s62, [#allocation9], 128, 128, 8
    $region25: #{tpu_custom_call.1} parent=1 // pred_fallthru
      _
    // Predicated region
    $region26: #{tpu_custom_call.1} parent=1 // pred_check
      _
    $region27: #{tpu_custom_call.1} parent=1 // pred_check_branch
      %69 = sbr.rel (0) target = $region29
    $region28: #{tpu_custom_call.1} parent=1 // pred_region
      _
    $region29: #{tpu_custom_call.1} parent=1 // pred_fallthru
      _
    // Predicated region
    $region30: #{tpu_custom_call.1} parent=1 // pred_check
      _
    $region31: #{tpu_custom_call.1} parent=1 // pred_check_branch
      %71 = sbr.rel (0) target = $region33
    $region32: #{tpu_custom_call.1} parent=1 // pred_region
      %72 = dma.done [#allocation3], 256
    $region33: #{tpu_custom_call.1} parent=1 // pred_fallthru
      _
    // Predicated region
    $region34: #{tpu_custom_call.1} parent=1 // pred_check
      _
    $region35: #{tpu_custom_call.1} parent=1 // pred_check_branch
      %74 = sbr.rel (0) target = $region37
    $region36: #{tpu_custom_call.1} parent=1 // pred_region
      %75 = dma.done [#allocation6], 1024
    $region37: #{tpu_custom_call.1} parent=1 // pred_fallthru
      _
    // Predicated region
    $region38: #{tpu_custom_call.1} parent=1 // pred_check
      _
    $region39: #{tpu_custom_call.1} parent=1 // pred_check_branch
      %77 = sbr.rel (0) target = $region41
    $region40: #{tpu_custom_call.1} parent=1 // pred_region
      %78 = dma.done [#allocation6], 4096
    $region41: #{tpu_custom_call.1} parent=1 // pred_fallthru
      _
    // Predicated region
    $region42: #{tpu_custom_call.1} parent=1 // pred_check
      _
    $region43: #{tpu_custom_call.1} parent=1 // pred_check_branch
      %80 = sbr.rel (0) target = $region45
    $region44: #{tpu_custom_call.1} parent=1 // pred_region
      %81 = dma.done [#allocation9], 2048
    $region45: #{tpu_custom_call.1} parent=1 // pred_fallthru
      _
    %v82 = vld [vmem:[#allocation2] sm:$0xff]
    %v83 = vld [vmem:[#allocation2 + $0x8] sm:$0xff]
    %v84 = vld [vmem:[#allocation5] sm:$0xff]
    %v85 = vld [vmem:[#allocation5 + $0x8] sm:$0xff]
    %v86 = vld [vmem:[#allocation5 + $0x10] sm:$0xff]
    %v87 = vld [vmem:[#allocation5 + $0x18] sm:$0xff]
    %v88 = vld [vmem:[#allocation5 + $0x20] sm:$0xff]
    %v89 = vld [vmem:[#allocation5 + $0x28] sm:$0xff]
    %v90 = vld [vmem:[#allocation5 + $0x30] sm:$0xff]
    %v91 = vld [vmem:[#allocation5 + $0x38] sm:$0xff]
    %v92 = vld [vmem:[%s2] sm:$0x3]
    %v94 = vlaneseq
    %v95 = vshrl.u32 %v94, 7
    %v96 = vsub.s32 0, %v95
    %v97 = vrot.slane %v92, %v96
    %v98 = vlaneseq
    %v99 = vshrl.u32 %v98, 7
    %v100 = vsub.s32 1, %v99
    %v101 = vrot.slane %v92, %v100
    %vm104 = vcmask 261120
    %v106 = vsel %vm104, %v82, 0
    %v109 = vsel %vm104, %v83, 0
    %111 = vmatprep.subr.mxu0 0.0
    %112 = vmatpush1.msra.mxu0 0.0
    %113 = vmatprep.subr.mxu0 0.0
    %114 = vmatpush1.msra.mxu0 0.0
    %115 = vmatprep.subr.mxu0 0.0
    %116 = vmatpush1.msra.mxu0 0.0
    %117 = vmatprep.subr.mxu0 0.0
    %118 = vmatpush1.msra.mxu0 0.0
    %119 = vmatprep.subr.mxu0 0.0
    %120 = vmatpush1.msra.mxu0 0.0
    %121 = vmatprep.subr.mxu0 0.0
    %122 = vmatpush1.msra.mxu0 0.0
    %123 = vmatprep.subr.mxu0 0.0
    %124 = vmatpush1.msra.mxu0 0.0
    %125 = vmatprep.subr.mxu0 0.0
    %126 = vmatpush1.msra.mxu0 0.0
    %127 = vmatprep.subr.mxu0 0.0
    %128 = vmatpush1.msra.mxu0 0.0
    %129 = vmatprep.subr.mxu0 0.0
    %130 = vmatpush1.msra.mxu0 0.0
    %131 = vmatprep.subr.mxu0 0.0
    %132 = vmatpush1.msra.mxu0 0.0
    %133 = vmatprep.subr.mxu0 0.0
    %134 = vmatpush1.msra.mxu0 0.0
    %135 = vmatprep.subr.mxu0 %v91
    %136 = vmatpush1.msra.mxu0 %v90
    %137 = vmatprep.subr.mxu0 %v89
    %138 = vmatpush1.msra.mxu0 %v88
    %139 = vmatprep.subr.mxu0 %v87
    %140 = vmatpush1.msra.mxu0 %v86
    %141 = vmatprep.subr.mxu0 %v85
    %142 = vmatpush1.msra.mxu0 %v84
    %143 = vmatprep.subr.mxu0 0.0
    %144 = vmatpush2.msra.mxu0 0.0
    %145 = vmatprep.subr.mxu0 0.0
    %146 = vmatpush2.msra.mxu0 0.0
    %147 = vmatprep.subr.mxu0 0.0
    %148 = vmatpush2.msra.mxu0 0.0
    %149 = vmatprep.subr.mxu0 0.0
    %150 = vmatpush2.msra.mxu0 0.0
    %151 = vmatprep.subr.mxu0 0.0
    %152 = vmatpush2.msra.mxu0 0.0
    %153 = vmatprep.subr.mxu0 0.0
    %154 = vmatpush2.msra.mxu0 0.0
    %155 = vmatprep.subr.mxu0 0.0
    %156 = vmatpush2.msra.mxu0 0.0
    %157 = vmatprep.subr.mxu0 0.0
    %158 = vmatpush2.msra.mxu0 0.0
    %159 = vmatprep.subr.mxu0 0.0
    %160 = vmatpush2.msra.mxu0 0.0
    %161 = vmatprep.subr.mxu0 0.0
    %162 = vmatpush2.msra.mxu0 0.0
    %163 = vmatprep.subr.mxu0 0.0
    %164 = vmatpush2.msra.mxu0 0.0
    %165 = vmatprep.subr.mxu0 0.0
    %166 = vmatpush2.msra.mxu0 0.0
    %167 = vmatprep.subr.mxu0 0.0
    %168 = vmatpush2.msra.mxu0 0.0
    %169 = vmatprep.subr.mxu0 0.0
    %170 = vmatpush2.msra.mxu0 0.0
    %171 = vmatprep.subr.mxu0 0.0
    %172 = vmatpush2.msra.mxu0 0.0
    %173 = vmatprep.subr.mxu0 0.0
    %174 = vmatpush2.msra.mxu0 0.0
    %175 = vmatprep.mubr.f32.mxu0 0.0
    %176 = vmatmul.mubr.f32.gmra.mxu0 %v106
    %v177 = vpop.f32.mrf.mxu0
    %v178 = vadd.f32 %v97, %v177
    %v179 = vpop.f32.mrf.mxu0
    %v180 = vadd.f32 %v101, %v179
    %181 = vmatprep.mubr.f32.mxu0 0.0
    %182 = vmatmul.mubr.f32.gmra.mxu0 %v109
    %v183 = vpop.f32.mrf.mxu0
    %v184 = vadd.f32 %v97, %v183
    %v185 = vpop.f32.mrf.mxu0
    %v186 = vadd.f32 %v101, %v185
    %187 = vdwg.mxu0
    %vm188 = vcmp.gt.f32.partialorder %v178, 0.0
    %vm189 = vcmp.gt.f32.partialorder %v180, 0.0
    %vm190 = vcmp.gt.f32.partialorder %v184, 0.0
    %vm191 = vcmp.gt.f32.partialorder %v186, 0.0
    %v192 = vmul.f32 %v178, 0.01
    %v193 = vmul.f32 %v180, 0.01
    %v194 = vmul.f32 %v184, 0.01
    %v195 = vmul.f32 %v186, 0.01
    %v196 = vsel %vm188, %v178, %v192
    %v197 = vsel %vm189, %v180, %v193
    %v198 = vsel %vm190, %v184, %v194
    %v199 = vsel %vm191, %v186, %v195
    %v200 = vrot.slane %v196, 4
    %v201 = vadd.f32 %v196, %v200
    %v202 = vrot.slane %v201, 2
    %v203 = vadd.f32 %v201, %v202
    %v204 = vrot.slane %v203, 1
    %v205 = vadd.f32 %v203, %v204
    %v206 = vrot.slane %v197, 4
    %v207 = vadd.f32 %v197, %v206
    %v208 = vrot.slane %v207, 2
    %v209 = vadd.f32 %v207, %v208
    %v210 = vrot.slane %v209, 1
    %v211 = vadd.f32 %v209, %v210
    %v212 = vrot.slane %v198, 4
    %v213 = vadd.f32 %v198, %v212
    %v214 = vrot.slane %v213, 2
    %v215 = vadd.f32 %v213, %v214
    %v216 = vrot.slane %v215, 1
    %v217 = vadd.f32 %v215, %v216
    %v218 = vrot.slane %v199, 4
    %v219 = vadd.f32 %v199, %v218
    %v220 = vrot.slane %v219, 2
    %v221 = vadd.f32 %v219, %v220
    %v222 = vrot.slane %v221, 1
    %v223 = vadd.f32 %v221, %v222
    %v224 = vld [vmem:[#allocation7] sm:$0xff]
    %v225 = vld [vmem:[#allocation7 + $0x8] sm:$0xff]
    %v226 = vld [vmem:[#allocation7 + $0x10] sm:$0xff]
    %v227 = vld [vmem:[#allocation7 + $0x18] sm:$0xff]
    %v228 = vld [vmem:[#allocation7 + $0x20] sm:$0xff]
    %v229 = vld [vmem:[#allocation7 + $0x28] sm:$0xff]
    %v230 = vld [vmem:[#allocation7 + $0x30] sm:$0xff]
    %v231 = vld [vmem:[#allocation7 + $0x38] sm:$0xff]
    %v232 = vld [vmem:[#allocation7 + $0x40] sm:$0xff]
    %v233 = vld [vmem:[#allocation7 + $0x48] sm:$0xff]
    %v234 = vld [vmem:[#allocation7 + $0x50] sm:$0xff]
    %v235 = vld [vmem:[#allocation7 + $0x58] sm:$0xff]
    %v236 = vld [vmem:[#allocation7 + $0x60] sm:$0xff]
    %v237 = vld [vmem:[#allocation7 + $0x68] sm:$0xff]
    %v238 = vld [vmem:[#allocation7 + $0x70] sm:$0xff]
    %v239 = vld [vmem:[#allocation7 + $0x78] sm:$0xff]
    %v240 = vld [vmem:[#allocation7 + $0x80] sm:$0xff]
    %v241 = vld [vmem:[#allocation7 + $0x88] sm:$0xff]
    %v242 = vld [vmem:[#allocation7 + $0x90] sm:$0xff]
    %v243 = vld [vmem:[#allocation7 + $0x98] sm:$0xff]
    %v244 = vld [vmem:[#allocation7 + $0xa0] sm:$0xff]
    %v245 = vld [vmem:[#allocation7 + $0xa8] sm:$0xff]
    %v246 = vld [vmem:[#allocation7 + $0xb0] sm:$0xff]
    %v247 = vld [vmem:[#allocation7 + $0xb8] sm:$0xff]
    %v248 = vld [vmem:[#allocation7 + $0xc0] sm:$0xff]
    %v249 = vld [vmem:[#allocation7 + $0xc8] sm:$0xff]
    %v250 = vld [vmem:[#allocation7 + $0xd0] sm:$0xff]
    %v251 = vld [vmem:[#allocation7 + $0xd8] sm:$0xff]
    %v252 = vld [vmem:[#allocation7 + $0xe0] sm:$0xff]
    %v253 = vld [vmem:[#allocation7 + $0xe8] sm:$0xff]
    %v254 = vld [vmem:[#allocation7 + $0xf0] sm:$0xff]
    %v255 = vld [vmem:[#allocation7 + $0xf8] sm:$0xff]
    %v256 = vld [vmem:[%s4] sm:$0x1]
    %v258 = vlaneseq
    %v259 = vshrl.u32 %v258, 7
    %v260 = vsub.s32 0, %v259
    %v261 = vrot.slane %v256, %v260
    %vm267 = vcmask 1041409
    %v268 = vsel %vm267, %v217, %v205
    %v269 = vsel %vm267, %v223, %v211
    %272 = vmatprep.subr.mxu0 0.0
    %273 = vmatpush1.msra.mxu0 %v239
    %274 = vmatprep.subr.mxu0 0.0
    %275 = vmatpush1.msra.mxu0 %v238
    %276 = vmatprep.subr.mxu0 0.0
    %277 = vmatpush1.msra.mxu0 %v237
    %278 = vmatprep.subr.mxu0 0.0
    %279 = vmatpush1.msra.mxu0 %v236
    %280 = vmatprep.subr.mxu0 0.0
    %281 = vmatpush1.msra.mxu0 %v235
    %282 = vmatprep.subr.mxu0 0.0
    %283 = vmatpush1.msra.mxu0 %v234
    %284 = vmatprep.subr.mxu0 0.0
    %285 = vmatpush1.msra.mxu0 %v233
    %286 = vmatprep.subr.mxu0 0.0
    %287 = vmatpush1.msra.mxu0 %v232
    %288 = vmatprep.subr.mxu0 0.0
    %289 = vmatpush1.msra.mxu0 %v231
    %290 = vmatprep.subr.mxu0 0.0
    %291 = vmatpush1.msra.mxu0 %v230
    %292 = vmatprep.subr.mxu0 0.0
    %293 = vmatpush1.msra.mxu0 %v229
    %294 = vmatprep.subr.mxu0 0.0
    %295 = vmatpush1.msra.mxu0 %v228
    %296 = vmatprep.subr.mxu0 0.0
    %297 = vmatpush1.msra.mxu0 %v227
    %298 = vmatprep.subr.mxu0 0.0
    %299 = vmatpush1.msra.mxu0 %v226
    %300 = vmatprep.subr.mxu0 0.0
    %301 = vmatpush1.msra.mxu0 %v225
    %302 = vmatprep.subr.mxu0 0.0
    %303 = vmatpush1.msra.mxu0 %v224
    %304 = vmatprep.subr.mxu0 0.0
    %305 = vmatpush2.msra.mxu0 %v255
    %306 = vmatprep.subr.mxu0 0.0
    %307 = vmatpush2.msra.mxu0 %v254
    %308 = vmatprep.subr.mxu0 0.0
    %309 = vmatpush2.msra.mxu0 %v253
    %310 = vmatprep.subr.mxu0 0.0
    %311 = vmatpush2.msra.mxu0 %v252
    %312 = vmatprep.subr.mxu0 0.0
    %313 = vmatpush2.msra.mxu0 %v251
    %314 = vmatprep.subr.mxu0 0.0
    %315 = vmatpush2.msra.mxu0 %v250
    %316 = vmatprep.subr.mxu0 0.0
    %317 = vmatpush2.msra.mxu0 %v249
    %318 = vmatprep.subr.mxu0 0.0
    %319 = vmatpush2.msra.mxu0 %v248
    %320 = vmatprep.subr.mxu0 0.0
    %321 = vmatpush2.msra.mxu0 %v247
    %322 = vmatprep.subr.mxu0 0.0
    %323 = vmatpush2.msra.mxu0 %v246
    %324 = vmatprep.subr.mxu0 0.0
    %325 = vmatpush2.msra.mxu0 %v245
    %326 = vmatprep.subr.mxu0 0.0
    %327 = vmatpush2.msra.mxu0 %v244
    %328 = vmatprep.subr.mxu0 0.0
    %329 = vmatpush2.msra.mxu0 %v243
    %330 = vmatprep.subr.mxu0 0.0
    %331 = vmatpush2.msra.mxu0 %v242
    %332 = vmatprep.subr.mxu0 0.0
    %333 = vmatpush2.msra.mxu0 %v241
    %334 = vmatprep.subr.mxu0 0.0
    %335 = vmatpush2.msra.mxu0 %v240
    %336 = vmatprep.mubr.f32.mxu0 %v269
    %337 = vmatmul.mubr.f32.gmra.mxu0 %v268
    %v338 = vpop.f32.mrf.mxu0
    %v339 = vadd.f32 %v261, %v338
    %v340 = vpop.f32.mrf.mxu0
    %341 = vdwg.mxu0
    %vm342 = vcmp.gt.f32.partialorder %v339, 0.0
    %v343 = vmul.f32 %v339, 0.01
    %v344 = vsel %vm342, %v339, %v343
    %v345 = vld [vmem:[#allocation8] sm:$0xff]
    %v346 = vld [vmem:[#allocation8 + $0x8] sm:$0xff]
    %v347 = vld [vmem:[#allocation8 + $0x10] sm:$0xff]
    %v348 = vld [vmem:[#allocation8 + $0x18] sm:$0xff]
    %v349 = vld [vmem:[#allocation8 + $0x20] sm:$0xff]
    %v350 = vld [vmem:[#allocation8 + $0x28] sm:$0xff]
    %v351 = vld [vmem:[#allocation8 + $0x30] sm:$0xff]
    %v352 = vld [vmem:[#allocation8 + $0x38] sm:$0xff]
    %v353 = vld [vmem:[#allocation8 + $0x40] sm:$0xff]
    %v354 = vld [vmem:[#allocation8 + $0x48] sm:$0xff]
    %v355 = vld [vmem:[#allocation8 + $0x50] sm:$0xff]
    %v356 = vld [vmem:[#allocation8 + $0x58] sm:$0xff]
    %v357 = vld [vmem:[#allocation8 + $0x60] sm:$0xff]
    %v358 = vld [vmem:[#allocation8 + $0x68] sm:$0xff]
    %v359 = vld [vmem:[#allocation8 + $0x70] sm:$0xff]
    %v360 = vld [vmem:[#allocation8 + $0x78] sm:$0xff]
    %v361 = vld [vmem:[%s6] sm:$0x1]
    %v363 = vlaneseq
    %v364 = vshrl.u32 %v363, 7
    %v365 = vsub.s32 0, %v364
    %v366 = vrot.slane %v361, %v365
    %368 = vmatprep.subr.mxu0 0.0
    %369 = vmatpush1.msra.mxu0 %v360
    %370 = vmatprep.subr.mxu0 0.0
    %371 = vmatpush1.msra.mxu0 %v359
    %372 = vmatprep.subr.mxu0 0.0
    %373 = vmatpush1.msra.mxu0 %v358
    %374 = vmatprep.subr.mxu0 0.0
    %375 = vmatpush1.msra.mxu0 %v357
    %376 = vmatprep.subr.mxu0 0.0
    %377 = vmatpush1.msra.mxu0 %v356
    %378 = vmatprep.subr.mxu0 0.0
    %379 = vmatpush1.msra.mxu0 %v355
    %380 = vmatprep.subr.mxu0 0.0
    %381 = vmatpush1.msra.mxu0 %v354
    %382 = vmatprep.subr.mxu0 0.0
    %383 = vmatpush1.msra.mxu0 %v353
    %384 = vmatprep.subr.mxu0 0.0
    %385 = vmatpush1.msra.mxu0 %v352
    %386 = vmatprep.subr.mxu0 0.0
    %387 = vmatpush1.msra.mxu0 %v351
    %388 = vmatprep.subr.mxu0 0.0
    %389 = vmatpush1.msra.mxu0 %v350
    %390 = vmatprep.subr.mxu0 0.0
    %391 = vmatpush1.msra.mxu0 %v349
    %392 = vmatprep.subr.mxu0 0.0
    %393 = vmatpush1.msra.mxu0 %v348
    %394 = vmatprep.subr.mxu0 0.0
    %395 = vmatpush1.msra.mxu0 %v347
    %396 = vmatprep.subr.mxu0 0.0
    %397 = vmatpush1.msra.mxu0 %v346
    %398 = vmatprep.subr.mxu0 0.0
    %399 = vmatpush1.msra.mxu0 %v345
    %400 = vmatprep.subr.mxu0 0.0
    %401 = vmatpush2.msra.mxu0 0.0
    %402 = vmatprep.subr.mxu0 0.0
    %403 = vmatpush2.msra.mxu0 0.0
    %404 = vmatprep.subr.mxu0 0.0
    %405 = vmatpush2.msra.mxu0 0.0
    %406 = vmatprep.subr.mxu0 0.0
    %407 = vmatpush2.msra.mxu0 0.0
    %408 = vmatprep.subr.mxu0 0.0
    %409 = vmatpush2.msra.mxu0 0.0
    %410 = vmatprep.subr.mxu0 0.0
    %411 = vmatpush2.msra.mxu0 0.0
    %412 = vmatprep.subr.mxu0 0.0
    %413 = vmatpush2.msra.mxu0 0.0
    %414 = vmatprep.subr.mxu0 0.0
    %415 = vmatpush2.msra.mxu0 0.0
    %416 = vmatprep.subr.mxu0 0.0
    %417 = vmatpush2.msra.mxu0 0.0
    %418 = vmatprep.subr.mxu0 0.0
    %419 = vmatpush2.msra.mxu0 0.0
    %420 = vmatprep.subr.mxu0 0.0
    %421 = vmatpush2.msra.mxu0 0.0
    %422 = vmatprep.subr.mxu0 0.0
    %423 = vmatpush2.msra.mxu0 0.0
    %424 = vmatprep.subr.mxu0 0.0
    %425 = vmatpush2.msra.mxu0 0.0
    %426 = vmatprep.subr.mxu0 0.0
    %427 = vmatpush2.msra.mxu0 0.0
    %428 = vmatprep.subr.mxu0 0.0
    %429 = vmatpush2.msra.mxu0 0.0
    %430 = vmatprep.subr.mxu0 0.0
    %431 = vmatpush2.msra.mxu0 0.0
    %432 = vmatprep.mubr.f32.mxu0 0.0
    %433 = vmatmul.mubr.f32.gmra.mxu0 %v344
    %v434 = vpop.f32.mrf.mxu0
    %v435 = vadd.f32 %v366, %v434
    %v436 = vpop.f32.mrf.mxu0
    %437 = vdwg.mxu0
    %438 = vst [vmem:[#allocation10] sm:$0x3] %v435
    // Predicated region
    $region46: #{tpu_custom_call.1} parent=1 // pred_check
      _
    $region47: #{tpu_custom_call.1} parent=1 // pred_check_branch
      %440 = sbr.rel (0) target = $region49
    $region48: #{tpu_custom_call.1} parent=1 // pred_region
      %s442 = ssub.s32 32, 32
      %443 = vsyncadd [#allocation4], %s442
      %s445 = sshll.u32 [#allocation10], 4
      %s446 = int_to_ptr.vmem [resolvable:$true] %s445
      %448 = dma.vmem_to_hbm [thread:$0]  %s446, 32, %s7, [#allocation4]
    $region49: #{tpu_custom_call.1} parent=1 // pred_fallthru
      _
    // Predicated region
    $region50: #{tpu_custom_call.1} parent=1 // pred_check
      _
    $region51: #{tpu_custom_call.1} parent=1 // pred_check_branch
      %450 = sbr.rel (0) target = $region53
    $region52: #{tpu_custom_call.1} parent=1 // pred_region
      %451 = dma.done [#allocation4], 32
    $region53: #{tpu_custom_call.1} parent=1 // pred_fallthru
      _
    %452 = vsyncpa [#allocation3], 1
    %453 = vsyncpa [#allocation6], 1
    %454 = vsyncpa [#allocation9], 1
    %455 = vsyncpa [#allocation4], 1

</llo_original>
